<compile_context>
chip_gen: v7x
topology: tpu7x:2x2x1
jax: 0.10.0
libtpu: 0.0.40
codegen_flags: <defaults>
</compile_context>

<pallas_src>
import jax
import jax.numpy as jnp
from jax.experimental import pallas as pl
from jax.experimental.pallas import tpu as pltpu

LANE = 128

# Per-block VMEM budget for the three streamed arrays (pred + target + f32
# out).  12 MiB/block -> 24 MiB double-buffered: safe on every generation
# (v7x: 32 MiB scoped / 64 MiB physical; v5e/v6e: limit raised below).
_BLOCK_BYTES_BUDGET = 12 * 1024 * 1024
_VMEM_LIMIT_BYTES = 32 * 1024 * 1024  # raises v5e's 16 MiB default; <= v7x physical


def _sublane_pack(dtype):
    """Sublane multiple required for a given dtype's block shape."""
    itemsize = jnp.dtype(dtype).itemsize
    return {4: 8, 2: 16, 1: 32}.get(itemsize, 8)


def _num_tensorcores():
    """Best-effort TensorCores-per-chip (2 on v7x, 1 on v5e/v6e)."""
    try:
        info = pltpu.get_tpu_info()
        for attr in ("num_cores", "num_cores_per_chip", "core_count",
                     "tensorcores_per_chip", "cores_per_chip"):
            v = getattr(info, attr, None)
            if isinstance(v, int) and v > 0:
                return min(v, 2)
    except Exception:
        pass
    try:
        dev = jax.devices()[0]
        for attr in ("num_cores", "core_count"):
            v = getattr(dev, attr, None)
            if isinstance(v, int) and v > 0:
                return min(v, 2)
    except Exception:
        pass
    return 1


def _mse_logits_math(pred_f32, target_f32):
    """Elementwise loss math in f32 (shared by the kernel and the tail)."""
    x = jnp.clip(jax.nn.sigmoid(pred_f32), 0.0001, 1.0 - 0.0001)
    obj_id = (target_f32 == 1.0).astype(jnp.float32)
    noobj_id = (target_f32 == 0.0).astype(jnp.float32)
    return obj_id * (x - target_f32) ** 2 + noobj_id * (x * x)


def _mse_with_logits_kernel(pred_ref, target_ref, out_ref):
    # Pure VPU/EUP elementwise path; kernel is HBM-bound so compute is hidden.
    out_ref[...] = _mse_logits_math(
        pred_ref[...].astype(jnp.float32),
        target_ref[...].astype(jnp.float32),
    )


def _run_kernel_2d(pred2d, tgt2d):
    """Run the Pallas kernel over a lane-dense (rows, 128) slab."""
    rows = pred2d.shape[0]
    pack = max(_sublane_pack(pred2d.dtype), _sublane_pack(tgt2d.dtype), 8)
    bytes_per_elem = (
        jnp.dtype(pred2d.dtype).itemsize + jnp.dtype(tgt2d.dtype).itemsize + 4
    )

    # Largest lane-dense block that fits the per-block VMEM budget.
    tr_budget = max(pack, (_BLOCK_BYTES_BUDGET // (LANE * bytes_per_elem)) // pack * pack)
    tr = rows if rows <= tr_budget else tr_budget

    # Megacore: only shrink tiles to lengthen the parallel grid on 2-TC chips
    # (v7x); on single-TC v5e/v6e keep the largest tile that fits VMEM.
    num_cores = _num_tensorcores()
    if num_cores > 1:
        min_steps = 2 * num_cores
        if rows >= min_steps * pack and pl.cdiv(rows, tr) < min_steps:
            tr = max(pack, (pl.cdiv(rows, min_steps) // pack) * pack)

    grid = (pl.cdiv(rows, tr),)  # ragged last block (if any) is masked by Pallas

    n_elem = rows * LANE
    cost = pl.CostEstimate(
        flops=10 * n_elem,
        transcendentals=n_elem,
        bytes_accessed=n_elem * bytes_per_elem,
    )

    return pl.pallas_call(
        _mse_with_logits_kernel,
        out_shape=jax.ShapeDtypeStruct((rows, LANE), jnp.float32),
        grid_spec=pltpu.PrefetchScalarGridSpec(
            num_scalar_prefetch=0,
            grid=grid,
            in_specs=[
                pl.BlockSpec((tr, LANE), lambda i: (i, 0)),
                pl.BlockSpec((tr, LANE), lambda i: (i, 0)),
            ],
            out_specs=pl.BlockSpec((tr, LANE), lambda i: (i, 0)),
        ),
        compiler_params=pltpu.CompilerParams(
            dimension_semantics=("parallel",),
            vmem_limit_bytes=_VMEM_LIMIT_BYTES,
        ),
        cost_estimate=cost,
    )(pred2d, tgt2d)


def mse_with_logits(conf_pred, conf_target):
    assert conf_pred.shape == conf_target.shape
    orig_shape = conf_pred.shape
    n_elem = 1
    for d in orig_shape:
        n_elem *= int(d)

    pred_flat = jnp.ravel(conf_pred)   # contiguous reshape: zero-copy
    tgt_flat = jnp.ravel(conf_target)

    n_prefix = (n_elem // LANE) * LANE
    n_tail = n_elem - n_prefix

    pieces = []
    if n_prefix:
        if n_tail:
            # Ragged element count: kernel handles the 128-divisible prefix.
            pred2d = pred_flat[:n_prefix].reshape(n_prefix // LANE, LANE)
            tgt2d = tgt_flat[:n_prefix].reshape(n_prefix // LANE, LANE)
        else:
            # Common case: full array is a zero-copy (rows, 128) view.
            pred2d = pred_flat.reshape(n_prefix // LANE, LANE)
            tgt2d = tgt_flat.reshape(n_prefix // LANE, LANE)
        pieces.append(_run_kernel_2d(pred2d, tgt2d).reshape(-1))
    if n_tail:
        # Tiny (<128-element) tail handled in plain JAX; avoids padding both
        # inputs and slicing the output in HBM for ragged shapes.
        pieces.append(
            _mse_logits_math(
                pred_flat[n_prefix:].astype(jnp.float32),
                tgt_flat[n_prefix:].astype(jnp.float32),
            )
        )

    out_flat = pieces[0] if len(pieces) == 1 else jnp.concatenate(pieces)
    return out_flat.reshape(orig_shape)


def _reference(conf_pred, conf_target):
    # Pure-JAX reference mirroring the PyTorch module (computed in f32).
    conf_pred = jax.nn.sigmoid(conf_pred.astype(jnp.float32))
    x = jnp.clip(conf_pred, 0.0001, 1.0 - 0.0001)
    tgt = conf_target.astype(jnp.float32)
    obj_id = (tgt == 1.0).astype(jnp.float32)
    noobj_id = (tgt == 0.0).astype(jnp.float32)
    return (obj_id * (x - tgt) ** 2 + noobj_id * x ** 2).astype(jnp.float32)


if __name__ == "__main__":
    key = jax.random.PRNGKey(0)
    k1, k2, k3, k4 = jax.random.split(key, 4)

    # Primary test: float32 NCHW, element count divides 128 (zero-copy path).
    N, C, H, W = 2, 4, 16, 16  # layout: NCHW
    conf_pred = jax.random.normal(k1, (N, C, H, W), dtype=jnp.float32)
    tgt_raw = jax.random.uniform(k2, (N, C, H, W))
    conf_target = jnp.where(
        tgt_raw > 0.7, 1.0, jnp.where(tgt_raw < 0.65, 0.0, 0.5)
    ).astype(jnp.float32)

    out = jax.block_until_ready(mse_with_logits(conf_pred, conf_target))
    ref = _reference(conf_pred, conf_target)
    assert out.shape == ref.shape and out.dtype == jnp.float32
    assert jnp.allclose(out, ref, atol=1e-6, rtol=1e-6), "f32 mismatch vs reference"

    # Secondary test: bf16 inputs with a ragged element count (exercises the
    # no-upcast path, the prefix kernel with a full-dim block, and the pure-JAX
    # tail epilogue).
    shape2 = (3, 5, 7, 9)
    pred2 = jax.random.normal(k3, shape2, dtype=jnp.bfloat16)
    raw2 = jax.random.uniform(k4, shape2)
    tgt2 = jnp.where(raw2 > 0.7, 1.0, jnp.where(raw2 < 0.65, 0.0, 0.5)).astype(
        jnp.bfloat16
    )
    out2 = jax.block_until_ready(mse_with_logits(pred2, tgt2))
    ref2 = _reference(pred2, tgt2)
    assert out2.shape == shape2 and out2.dtype == jnp.float32
    assert jnp.allclose(out2, ref2, atol=2e-3, rtol=2e-3), "bf16 mismatch vs reference"

    print("KERNEL_OK")
</pallas_src>

<mosaic_0001>
module attributes {stable_mosaic.version = 11 : i64} {
  func.func @_mse_with_logits_kernel(%arg0: i32, %arg1: memref<16x128xf32, #tpu.memory_space<vmem>>, %arg2: memref<16x128xf32, #tpu.memory_space<vmem>>, %arg3: memref<16x128xf32, #tpu.memory_space<vmem>>) attributes {dimension_semantics = [#tpu.dimension_semantics<parallel>], iteration_bounds = array<i64: 1>, scalar_prefetch = 0 : i64, scratch_operands = 0 : i64, tpu.core_type = #tpu.core_type<tc>, window_params = [{transform_indices = @transform_0, window_bounds = array<i64: 16, 128>}, {transform_indices = @transform_1, window_bounds = array<i64: 16, 128>}, {transform_indices = @transform_2, window_bounds = array<i64: 16, 128>}]} {
    %c0 = arith.constant 0 : index
    %c0_0 = arith.constant 0 : index
    %0 = vector.load %arg1[%c0, %c0_0] : memref<16x128xf32, #tpu.memory_space<vmem>>, vector<16x128xf32>
    %c0_1 = arith.constant 0 : index
    %c0_2 = arith.constant 0 : index
    %1 = vector.load %arg2[%c0_1, %c0_2] : memref<16x128xf32, #tpu.memory_space<vmem>>, vector<16x128xf32>
    %2 = arith.negf %0 : vector<16x128xf32>
    %3 = math.exp %2 : vector<16x128xf32>
    %cst = arith.constant 1.000000e+00 : f32
    %4 = vector.broadcast %cst : f32 to vector<16x128xf32>
    %5 = arith.addf %4, %3 : vector<16x128xf32>
    %6 = arith.divf %4, %5 : vector<16x128xf32>
    %cst_3 = arith.constant 9.99999974E-5 : f32
    %cst_4 = arith.constant 0.999899983 : f32
    %7 = vector.broadcast %cst_3 : f32 to vector<16x128xf32>
    %8 = arith.maximumf %7, %6 : vector<16x128xf32>
    %9 = vector.broadcast %cst_4 : f32 to vector<16x128xf32>
    %10 = arith.minimumf %9, %8 : vector<16x128xf32>
    %cst_5 = arith.constant 1.000000e+00 : f32
    %11 = vector.broadcast %cst_5 : f32 to vector<16x128xf32>
    %12 = arith.cmpf oeq, %1, %11 : vector<16x128xf32>
    %13 = arith.extui %12 : vector<16x128xi1> to vector<16x128xi32>
    %14 = arith.sitofp %13 : vector<16x128xi32> to vector<16x128xf32>
    %cst_6 = arith.constant 0.000000e+00 : f32
    %15 = vector.broadcast %cst_6 : f32 to vector<16x128xf32>
    %16 = arith.cmpf oeq, %1, %15 : vector<16x128xf32>
    %17 = arith.extui %16 : vector<16x128xi1> to vector<16x128xi32>
    %18 = arith.sitofp %17 : vector<16x128xi32> to vector<16x128xf32>
    %19 = arith.subf %10, %1 : vector<16x128xf32>
    %20 = arith.mulf %19, %19 : vector<16x128xf32>
    %21 = arith.mulf %14, %20 : vector<16x128xf32>
    %22 = arith.mulf %10, %10 : vector<16x128xf32>
    %23 = arith.mulf %18, %22 : vector<16x128xf32>
    %24 = arith.addf %21, %23 : vector<16x128xf32>
    %c0_7 = arith.constant 0 : index
    %c0_8 = arith.constant 0 : index
    %25 = vector.load %arg3[%c0_7, %c0_8] : memref<16x128xf32, #tpu.memory_space<vmem>>, vector<16x128xf32>
    tpu.vector_store %arg3[%c0_7, %c0_8], %24 {strides = array<i32>} : memref<16x128xf32, #tpu.memory_space<vmem>>, vector<16x128xf32>,
    return
  }
  func.func @transform_0(%arg0: i32) -> (i32, i32) {
    %c0_i32 = arith.constant 0 : i32
    %c0_i32_0 = arith.constant 0 : i32
    return %arg0, %c0_i32 : i32, i32
  }
  func.func @transform_1(%arg0: i32) -> (i32, i32) {
    %c0_i32 = arith.constant 0 : i32
    %c0_i32_0 = arith.constant 0 : i32
    return %arg0, %c0_i32 : i32, i32
  }
  func.func @transform_2(%arg0: i32) -> (i32, i32) {
    %c0_i32 = arith.constant 0 : i32
    %c0_i32_0 = arith.constant 0 : i32
    return %arg0, %c0_i32 : i32, i32
  }
}

</mosaic_0001>

<llo_original>
// kernel: tpu_custom_call.1
$region0: #{tpu_custom_call.1}
  #allocation0 [shape = 'u32[]', space=smem, size = 0x4, offset = 0x4, fixed_abs, tag = 'smem constant byte address 0x4 - core index']
  #allocation1 [shape = 'u32[144,128]{1,0:T(1,128)}', space=vmem, size = 0x12000, scoped, tag = 'internal scratch']
  %s0 = inlined_call_operand.hbm [shape: f32[16,128], index: 0, kind: input, shape index: {}]
  %s1 = inlined_call_operand.hbm [shape: f32[16,128], index: 1, kind: input, shape index: {}]
  %s2 = inlined_call_operand.hbm [shape: f32[16,128], index: 2, kind: output, shape index: {}]
  %s3 = sld [smem:[#allocation0]]
  $region26: #{tpu_custom_call.1} parent=0
    _
  %s5 = ssub.s32 1, %s3
  %s6 = scalar_select 0, %s5, %s3
  $region1: #{tpu_custom_call.1} parent=0
    #allocation2 [shape = 'u8[8192]{0}', space=vmem, size = 0x2000, scoped, tag = 'input window, operand 0, single buffered']
    #allocation3 [shape = 's32[1]{0}', space=sflag, size = 0x4, scoped, tag = 'scoped memory for tpu_custom_call.1']
    #allocation4 [shape = 's32[1]{0}', space=sflag, size = 0x4, scoped, tag = 'scoped memory for tpu_custom_call.1']
    #allocation5 [shape = 'u8[8192]{0}', space=vmem, size = 0x2000, scoped, tag = 'input window, operand 1, single buffered']
    #allocation6 [shape = 's32[1]{0}', space=sflag, size = 0x4, scoped, tag = 'scoped memory for tpu_custom_call.1']
    #allocation7 [shape = 'u8[8192]{0}', space=vmem, size = 0x2000, scoped, tag = 'output window, operand 0, single buffered']
    %7 = vsyncpa [#allocation3], 0
    %8 = vsyncpa [#allocation6], 0
    %9 = vsyncpa [#allocation4], 0
    // Predicated region
    $region2: #{tpu_custom_call.1} parent=1 // pred_check
      _
    $region3: #{tpu_custom_call.1} parent=1 // pred_check_branch
      %11 = sbr.rel (0) target = $region5
    $region4: #{tpu_custom_call.1} parent=1 // pred_region
      %s13 = ssub.s32 256, 256
      %14 = vsyncadd [#allocation3], %s13
      %s15 = sshll.u32 [#allocation2], 4
      %s16 = int_to_ptr.vmem [resolvable:$true] %s15
      %21 = dma.hbm_to_vmem [thread:$0]  %s0, 256, %s16, [#allocation3], 128, 128, 8
    $region5: #{tpu_custom_call.1} parent=1 // pred_fallthru
      _
    // Predicated region
    $region6: #{tpu_custom_call.1} parent=1 // pred_check
      _
    $region7: #{tpu_custom_call.1} parent=1 // pred_check_branch
      %23 = sbr.rel (0) target = $region9
    $region8: #{tpu_custom_call.1} parent=1 // pred_region
      %s25 = ssub.s32 256, 256
      %26 = vsyncadd [#allocation6], %s25
      %s27 = sshll.u32 [#allocation5], 4
      %s28 = int_to_ptr.vmem [resolvable:$true] %s27
      %33 = dma.hbm_to_vmem [thread:$0]  %s1, 256, %s28, [#allocation6], 128, 128, 8
    $region9: #{tpu_custom_call.1} parent=1 // pred_fallthru
      _
    // Predicated region
    $region10: #{tpu_custom_call.1} parent=1 // pred_check
      _
    $region11: #{tpu_custom_call.1} parent=1 // pred_check_branch
      %35 = sbr.rel (0) target = $region13
    $region12: #{tpu_custom_call.1} parent=1 // pred_region
      %36 = dma.done [#allocation3], 256
    $region13: #{tpu_custom_call.1} parent=1 // pred_fallthru
      _
    // Predicated region
    $region14: #{tpu_custom_call.1} parent=1 // pred_check
      _
    $region15: #{tpu_custom_call.1} parent=1 // pred_check_branch
      %38 = sbr.rel (0) target = $region17
    $region16: #{tpu_custom_call.1} parent=1 // pred_region
      %39 = dma.done [#allocation6], 256
    $region17: #{tpu_custom_call.1} parent=1 // pred_fallthru
      _
    %v40 = vld [vmem:[#allocation2] sm:$0xff]
    %v41 = vld [vmem:[#allocation2 + $0x8] sm:$0xff]
    %v42 = vld [vmem:[#allocation5] sm:$0xff]
    %v43 = vld [vmem:[#allocation5 + $0x8] sm:$0xff]
    %v44 = vxor.u32 %v40, 2147483648
    %v45 = vxor.u32 %v41, 2147483648
    %v46 = vmul.f32 %v44, 1.442695
    %v47 = vpow.pop %v46
    %v48 = vmul.f32 %v45, 1.442695
    %v49 = vpow.pop %v48
    %v50 = vadd.f32 %v47, 1.0
    %v51 = vadd.f32 %v49, 1.0
    %v52 = vrcp.pop %v50
    %v53 = vmul.f32 1.0, %v52
    %v54 = vrcp.pop %v51
    %v55 = vmul.f32 1.0, %v54
    %v56 = vmax.f32 %v53, 0.0001
    %v57 = vmax.f32 %v55, 0.0001
    %v58 = vmin.f32 %v56, 0.9999
    %v59 = vmin.f32 %v57, 0.9999
    %vm60 = vcmp.eq.f32.partialorder %v42, 1.0
    %vm61 = vcmp.eq.f32.partialorder %v43, 1.0
    %v62 = vsel %vm60, 1, 0
    %v63 = vsel %vm61, 1, 0
    %v64 = vcvt.s32.f32 %v62
    %v65 = vcvt.s32.f32 %v63
    %vm66 = vcmp.eq.f32.partialorder %v42, 0.0
    %vm67 = vcmp.eq.f32.partialorder %v43, 0.0
    %v68 = vsel %vm66, 1, 0
    %v69 = vsel %vm67, 1, 0
    %v70 = vcvt.s32.f32 %v68
    %v71 = vcvt.s32.f32 %v69
    %v72 = vsub.f32 %v58, %v42
    %v73 = vsub.f32 %v59, %v43
    %v74 = vmul.f32 %v72, %v72
    %v75 = vmul.f32 %v73, %v73
    %v76 = vmul.f32 %v64, %v74
    %v77 = vmul.f32 %v65, %v75
    %v78 = vmul.f32 %v58, %v58
    %v79 = vmul.f32 %v59, %v59
    %v80 = vmul.f32 %v70, %v78
    %v81 = vmul.f32 %v71, %v79
    %v82 = vadd.f32 %v76, %v80
    %v83 = vadd.f32 %v77, %v81
    %84 = vst [vmem:[#allocation7] sm:$0xff] %v82
    %85 = vst [vmem:[#allocation7 + $0x8] sm:$0xff] %v83
    // Predicated region
    $region18: #{tpu_custom_call.1} parent=1 // pred_check
      _
    $region19: #{tpu_custom_call.1} parent=1 // pred_check_branch
      %87 = sbr.rel (0) target = $region21
    $region20: #{tpu_custom_call.1} parent=1 // pred_region
      %s89 = ssub.s32 256, 256
      %90 = vsyncadd [#allocation4], %s89
      %s91 = sshll.u32 [#allocation7], 4
      %s92 = int_to_ptr.vmem [resolvable:$true] %s91
      %97 = dma.vmem_to_hbm [thread:$0]  %s92, 256, %s2, [#allocation4], 128, 128, 8
    $region21: #{tpu_custom_call.1} parent=1 // pred_fallthru
      _
    // Predicated region
    $region22: #{tpu_custom_call.1} parent=1 // pred_check
      _
    $region23: #{tpu_custom_call.1} parent=1 // pred_check_branch
      %99 = sbr.rel (0) target = $region25
    $region24: #{tpu_custom_call.1} parent=1 // pred_region
      %100 = dma.done [#allocation4], 256
    $region25: #{tpu_custom_call.1} parent=1 // pred_fallthru
      _
    %101 = vsyncpa [#allocation3], 1
    %102 = vsyncpa [#allocation6], 1
    %103 = vsyncpa [#allocation4], 1

</llo_original>
